<compile_context>
chip_gen: v7x
topology: tpu7x:2x2x1
jax: 0.10.0
libtpu: 0.0.40
codegen_flags: <defaults>
</compile_context>

<pallas_src>
import functools
import math

import jax
import jax.numpy as jnp
from jax import lax
from jax.experimental import pallas as pl
from jax.experimental.pallas import tpu as pltpu

_MASK_VALUE = -1000000.0   # same constant as the torch masked_softmax reference
_PAD_VALUE = -1.0e30       # only for K-padding columns (not present in reference)


def _round_up(x, m):
    return ((x + m - 1) // m) * m


def _attn_kernel(*refs, masked, k_real, k_padded, inv_sqrt_d):
    if masked:
        (delta_ref, q_ref, valid_ref, kt_ref, v_ref, out_ref,
         dq_ref, m_ref, l_ref, acc_ref) = refs
    else:
        (delta_ref, q_ref, kt_ref, v_ref, out_ref,
         dq_ref, m_ref, l_ref, acc_ref) = refs
        valid_ref = None

    kb = pl.program_id(1)
    tk = kt_ref.shape[-1]

    @pl.when(kb == 0)
    def _init():
        # dq only depends on the row block -> computed once, reused for every K tile.
        dq = (delta_ref[...].astype(jnp.float32) *
              q_ref[...].astype(jnp.float32)) * jnp.float32(inv_sqrt_d)
        dq_ref[...] = dq.astype(dq_ref.dtype)
        m_ref[...] = jnp.full_like(m_ref, -jnp.inf)
        l_ref[...] = jnp.zeros_like(l_ref)
        acc_ref[...] = jnp.zeros_like(acc_ref)

    # (TR, d) @ (d, TK) plain NN matmul; keys were pre-transposed (lane-dense, bf16).
    s = lax.dot_general(
        dq_ref[...], kt_ref[...],
        dimension_numbers=(((1,), (0,)), ((), ())),
        preferred_element_type=jnp.float32)

    if masked:
        col = kb * tk + lax.broadcasted_iota(jnp.int32, s.shape, 1)
        if k_padded:   # static: fuse valid mask and K-pad mask into one select
            neg = jnp.where(col < k_real,
                            jnp.float32(_MASK_VALUE), jnp.float32(_PAD_VALUE))
            s = jnp.where(col < valid_ref[...], s, neg)
        else:
            s = jnp.where(col < valid_ref[...], s, jnp.float32(_MASK_VALUE))
    elif k_padded:
        col = kb * tk + lax.broadcasted_iota(jnp.int32, s.shape, 1)
        s = jnp.where(col < k_real, s, jnp.float32(_PAD_VALUE))

    # Online (flash-style) softmax accumulation across K tiles (all f32).
    m_prev = m_ref[...]
    m_cur = jnp.maximum(m_prev, jnp.max(s, axis=-1, keepdims=True))
    alpha = jnp.exp(m_prev - m_cur)
    p = jnp.exp(s - m_cur)
    l_ref[...] = alpha * l_ref[...] + jnp.sum(p, axis=-1, keepdims=True)
    acc_ref[...] = alpha * acc_ref[...] + jnp.dot(
        p.astype(v_ref.dtype), v_ref[...], preferred_element_type=jnp.float32)
    m_ref[...] = m_cur

    @pl.when(kb == pl.num_programs(1) - 1)
    def _finalize():
        # Deferred normalization on the (rows, Dv) output; reciprocal on the EUP.
        # TODO(synk): nn.Dropout treated as identity (inference) — no RNG dropout.
        inv_l = pl.reciprocal(l_ref[...], approx=True)
        out_ref[...] = (acc_ref[...] * inv_l).astype(out_ref.dtype)


def dot_product_attention(delta, queries, keys, values, valid_lens=None,
                          *, row_tile=None, kv_tile=512,
                          compute_dtype=jnp.bfloat16):
    B, Q, d = queries.shape
    K, dk = keys.shape
    Kv, Dv = values.shape
    assert dk == d and Kv == K
    out_dtype = queries.dtype
    masked = valid_lens is not None

    # ---------------- generation-aware VMEM budget -------------------------
    vmem_cap = 64 * 1024 * 1024        # conservative default (v7x per-TC)
    try:
        info = pltpu.get_tpu_info()
        cap = getattr(info, "vmem_capacity_bytes", None)
        if cap:
            vmem_cap = int(cap)
    except Exception:
        pass
    big_vmem = vmem_cap >= 100 * 1024 * 1024      # v5e / v6e (128 MiB)
    if row_tile is None:
        row_tile = 1024 if big_vmem else 512

    # ---------------- delta kept small; broadcast happens in-kernel --------
    delta = jnp.asarray(delta, dtype=queries.dtype)
    assert jnp.broadcast_shapes(delta.shape, (B, Q, d)) == (B, Q, d)
    if delta.ndim < 3:
        delta = delta.reshape((1,) * (3 - delta.ndim) + delta.shape)
    Dd = delta.shape[-1]                       # 1 or d
    delta2 = jnp.broadcast_to(delta, (B, Q, Dd)).reshape(B * Q, Dd)

    # ---------------- flatten batch into rows ------------------------------
    q2 = queries.reshape(B * Q, d)
    N = B * Q

    # per-row valid length (repeat_interleave semantics of masked_softmax)
    valid2 = None
    if masked:
        vl = jnp.asarray(valid_lens)
        if vl.ndim == 1:
            valid_rows = jnp.repeat(vl.astype(jnp.int32), Q)
        else:
            valid_rows = vl.reshape(-1).astype(jnp.int32)
        valid2 = valid_rows.reshape(N, 1)

    # ---------------- adaptive row tile (minimize padding, feed both TCs) --
    nblocks = max(1, pl.cdiv(N, row_tile))
    if (not big_vmem) and N >= 16:
        nblocks = max(nblocks, 2)      # v7x: keep >=2 row blocks for 2 TensorCores
    TR = _round_up(pl.cdiv(N, nblocks), 8)
    NP = _round_up(N, TR)
    if NP != N:
        q2 = jnp.pad(q2, ((0, NP - N), (0, 0)))
        delta2 = jnp.pad(delta2, ((0, NP - N), (0, 0)))
        if masked:
            valid2 = jnp.pad(valid2, ((0, NP - N), (0, 0)), constant_values=K)

    # ---------------- K tiling: resident K/V when they are small -----------
    kv_bytes = K * (d + Dv) * 2                         # bf16 K^T + V
    resident_thresh = (16 if big_vmem else 8) * 1024 * 1024
    if kv_bytes <= resident_thresh:
        TK = _round_up(K, 8)            # single K step; K/V DMA'd exactly once
    else:
        TK = min(kv_tile, 512)
        TK = _round_up(TK, 128)         # lane-dense keys tile
    KP = _round_up(K, TK)
    k_padded = KP != K

    # keys pre-transposed (d, K) and cast to compute dtype; values cast too.
    kT = jnp.transpose(keys).astype(compute_dtype)
    v_p = values.astype(compute_dtype)
    if k_padded:
        kT = jnp.pad(kT, ((0, 0), (0, KP - K)))
        v_p = jnp.pad(v_p, ((0, KP - K), (0, 0)))

    grid = (NP // TR, KP // TK)

    # ---------------- VMEM estimate (incl. (TR,TK) temporaries) ------------
    qb = jnp.dtype(queries.dtype).itemsize
    cb = jnp.dtype(compute_dtype).itemsize
    ob = jnp.dtype(out_dtype).itemsize
    blk_bytes = 2 * (TR * Dd * qb + TR * d * qb + (TR * 4 if masked else 0)
                     + d * TK * cb + TK * Dv * cb + TR * Dv * ob)
    scratch_bytes = TR * d * cb + 2 * TR * 4 + TR * Dv * 4
    temp_bytes = 4 * TR * TK * 4                       # s, p, mask temps (f32)
    need = blk_bytes + scratch_bytes + temp_bytes
    vmem_limit = int(min(vmem_cap * 3 // 4, 100 * 1024 * 1024,
                         max(4 * 1024 * 1024, int(1.5 * need))))

    kernel = functools.partial(
        _attn_kernel, masked=masked, k_real=K, k_padded=k_padded,
        inv_sqrt_d=1.0 / math.sqrt(d))

    in_specs = [
        pl.BlockSpec((TR, Dd), lambda r, k: (r, 0)),   # delta (broadcast in-kernel)
        pl.BlockSpec((TR, d), lambda r, k: (r, 0)),    # queries
    ]
    inputs = [delta2, q2]
    if masked:
        in_specs.append(pl.BlockSpec((TR, 1), lambda r, k: (r, 0)))
        inputs.append(valid2)
    in_specs += [
        pl.BlockSpec((d, TK), lambda r, k: (0, k)),    # keys^T tile (lane-dense)
        pl.BlockSpec((TK, Dv), lambda r, k: (k, 0)),   # values tile
    ]
    inputs += [kT, v_p]

    grid_spec = pltpu.PrefetchScalarGridSpec(
        num_scalar_prefetch=0,
        grid=grid,
        in_specs=in_specs,
        out_specs=pl.BlockSpec((TR, Dv), lambda r, k: (r, 0)),
        scratch_shapes=[
            pltpu.VMEM((TR, d), compute_dtype),   # hoisted dq (bf16)
            pltpu.VMEM((TR, 1), jnp.float32),     # running max
            pltpu.VMEM((TR, 1), jnp.float32),     # running denom
            pltpu.VMEM((TR, Dv), jnp.float32),    # output accumulator
        ],
    )

    out2 = pl.pallas_call(
        kernel,
        out_shape=jax.ShapeDtypeStruct((NP, Dv), out_dtype),
        grid_spec=grid_spec,
        compiler_params=pltpu.CompilerParams(
            dimension_semantics=("parallel", "arbitrary"),
            vmem_limit_bytes=vmem_limit),
    )(*inputs)

    return out2[:N].reshape(B, Q, Dv)


def _reference(delta, q, k, v, valid_lens):
    d = q.shape[-1]
    dq = delta * q
    scores = jnp.einsum("bqd,kd->bqk", dq, k) / math.sqrt(d)
    if valid_lens is not None:
        mask = jnp.arange(k.shape[0])[None, None, :] < valid_lens[:, None, None]
        scores = jnp.where(mask, scores, jnp.float32(_MASK_VALUE))
    w = jax.nn.softmax(scores, axis=-1)
    return jnp.einsum("bqk,kv->bqv", w, v)


if __name__ == "__main__":
    key = jax.random.PRNGKey(0)
    k1, k2, k3, k4, k5 = jax.random.split(key, 5)

    B, Q, K, d, Dv = 2, 8, 16, 32, 32
    queries = jax.random.normal(k1, (B, Q, d), dtype=jnp.float32)
    keys = jax.random.normal(k2, (K, d), dtype=jnp.float32)
    values = jax.random.normal(k3, (K, Dv), dtype=jnp.float32)
    delta_full = jax.random.uniform(k4, (B, Q, d), dtype=jnp.float32)
    delta_small = jax.random.uniform(k5, (B, Q, 1), dtype=jnp.float32)
    valid_lens = jnp.array([5, K], dtype=jnp.int32)

    cases = [
        (delta_small, valid_lens),   # broadcast delta path (no wrapper materialization)
        (delta_full, valid_lens),    # full-shape delta path
        (delta_full, None),          # unmasked softmax path (mask code skipped)
    ]
    for dlt, vl in cases:
        out = dot_product_attention(dlt, queries, keys, values, vl)
        out = jax.block_until_ready(out)
        ref = _reference(dlt, queries, keys, values, vl)
        assert out.shape == (B, Q, Dv)
        # bf16 MXU path -> slightly looser tolerance than pure-f32.
        assert jnp.allclose(out, ref, atol=3e-2, rtol=3e-2), "mismatch vs reference"

    print("KERNEL_OK")
</pallas_src>

<mosaic_0001>
module attributes {stable_mosaic.version = 11 : i64} {
  func.func @_attn_kernel(%arg0: i32, %arg1: i32, %arg2: memref<8x1xf32, #tpu.memory_space<vmem>>, %arg3: memref<8x32xf32, #tpu.memory_space<vmem>>, %arg4: memref<8x1xi32, #tpu.memory_space<vmem>>, %arg5: memref<32x16xbf16, #tpu.memory_space<vmem>>, %arg6: memref<16x32xbf16, #tpu.memory_space<vmem>>, %arg7: memref<8x32xf32, #tpu.memory_space<vmem>>, %arg8: memref<8x32xbf16, #tpu.memory_space<vmem>>, %arg9: memref<8x1xf32, #tpu.memory_space<vmem>>, %arg10: memref<8x1xf32, #tpu.memory_space<vmem>>, %arg11: memref<8x32xf32, #tpu.memory_space<vmem>>) attributes {dimension_semantics = [#tpu.dimension_semantics<parallel>, #tpu.dimension_semantics<arbitrary>], iteration_bounds = array<i64: 2, 1>, scalar_prefetch = 0 : i64, scratch_operands = 4 : i64, tpu.core_type = #tpu.core_type<tc>, window_params = [{transform_indices = @transform_0, window_bounds = array<i64: 8, 1>}, {transform_indices = @transform_1, window_bounds = array<i64: 8, 32>}, {transform_indices = @transform_2, window_bounds = array<i64: 8, 1>}, {transform_indices = @transform_3, window_bounds = array<i64: 32, 16>}, {transform_indices = @transform_4, window_bounds = array<i64: 16, 32>}, {transform_indices = @transform_5, window_bounds = array<i64: 8, 32>}]} {
    %c0_i32 = arith.constant 0 : i32
    %0 = arith.cmpi eq, %arg1, %c0_i32 : i32
    %1 = arith.extui %0 : i1 to i32
    %c0_i32_0 = arith.constant 0 : i32
    %2 = arith.cmpi ne, %1, %c0_i32_0 : i32
    scf.if %2 {
      %c0_26 = arith.constant 0 : index
      %c0_27 = arith.constant 0 : index
      %42 = vector.load %arg2[%c0_26, %c0_27] : memref<8x1xf32, #tpu.memory_space<vmem>>, vector<8x1xf32>
      %c0_28 = arith.constant 0 : index
      %c0_29 = arith.constant 0 : index
      %43 = vector.load %arg3[%c0_28, %c0_29] : memref<8x32xf32, #tpu.memory_space<vmem>>, vector<8x32xf32>
      %44 = vector.broadcast %42 : vector<8x1xf32> to vector<8x32xf32>
      %45 = arith.mulf %44, %43 : vector<8x32xf32>
      %cst_30 = arith.constant 0.176776692 : f32
      %46 = vector.broadcast %cst_30 : f32 to vector<8x32xf32>
      %47 = arith.mulf %45, %46 : vector<8x32xf32>
      %48 = arith.truncf %47 : vector<8x32xf32> to vector<8x32xbf16>
      %c0_31 = arith.constant 0 : index
      %c0_32 = arith.constant 0 : index
      %49 = vector.load %arg8[%c0_31, %c0_32] : memref<8x32xbf16, #tpu.memory_space<vmem>>, vector<8x32xbf16>
      tpu.vector_store %arg8[%c0_31, %c0_32], %48 {strides = array<i32>} : memref<8x32xbf16, #tpu.memory_space<vmem>>, vector<8x32xbf16>,
      %cst_33 = arith.constant 0xFF800000 : f32
      %50 = vector.broadcast %cst_33 : f32 to vector<8x1xf32>
      %c0_34 = arith.constant 0 : index
      %c0_35 = arith.constant 0 : index
      %51 = vector.load %arg9[%c0_34, %c0_35] : memref<8x1xf32, #tpu.memory_space<vmem>>, vector<8x1xf32>
      tpu.vector_store %arg9[%c0_34, %c0_35], %50 {strides = array<i32>} : memref<8x1xf32, #tpu.memory_space<vmem>>, vector<8x1xf32>,
      %cst_36 = arith.constant 0.000000e+00 : f32
      %52 = vector.broadcast %cst_36 : f32 to vector<8x1xf32>
      %c0_37 = arith.constant 0 : index
      %c0_38 = arith.constant 0 : index
      %53 = vector.load %arg10[%c0_37, %c0_38] : memref<8x1xf32, #tpu.memory_space<vmem>>, vector<8x1xf32>
      tpu.vector_store %arg10[%c0_37, %c0_38], %52 {strides = array<i32>} : memref<8x1xf32, #tpu.memory_space<vmem>>, vector<8x1xf32>,
      %cst_39 = arith.constant 0.000000e+00 : f32
      %54 = vector.broadcast %cst_39 : f32 to vector<8x32xf32>
      %c0_40 = arith.constant 0 : index
      %c0_41 = arith.constant 0 : index
      %55 = vector.load %arg11[%c0_40, %c0_41] : memref<8x32xf32, #tpu.memory_space<vmem>>, vector<8x32xf32>
      tpu.vector_store %arg11[%c0_40, %c0_41], %54 {strides = array<i32>} : memref<8x32xf32, #tpu.memory_space<vmem>>, vector<8x32xf32>,
    } else {
    }
    %c0 = arith.constant 0 : index
    %c0_1 = arith.constant 0 : index
    %3 = vector.load %arg8[%c0, %c0_1] : memref<8x32xbf16, #tpu.memory_space<vmem>>, vector<8x32xbf16>
    %c0_2 = arith.constant 0 : index
    %c0_3 = arith.constant 0 : index
    %4 = vector.load %arg5[%c0_2, %c0_3] : memref<32x16xbf16, #tpu.memory_space<vmem>>, vector<32x16xbf16>
    %cst = arith.constant dense<0.000000e+00> : vector<8x16xf32>
    %5 = tpu.matmul %3, %4, %cst {dimension_numbers = #tpu.dot_dimension_numbers<[1], [0], [0], [1], [0, 0, 1, 1], [], []>} : vector<8x32xbf16>, vector<32x16xbf16>, vector<8x16xf32> -> vector<8x16xf32>
    %c16_i32 = arith.constant 16 : i32
    %6 = arith.muli %arg1, %c16_i32 : i32
    %7 = tpu.iota {dimensions = array<i32: 1>} : vector<8x16xi32>
    %8 = vector.broadcast %6 : i32 to vector<8x16xi32>
    %9 = arith.addi %8, %7 : vector<8x16xi32>
    %c0_4 = arith.constant 0 : index
    %c0_5 = arith.constant 0 : index
    %10 = vector.load %arg4[%c0_4, %c0_5] : memref<8x1xi32, #tpu.memory_space<vmem>>, vector<8x1xi32>
    %11 = vector.broadcast %10 : vector<8x1xi32> to vector<8x16xi32>
    %12 = arith.cmpi slt, %9, %11 : vector<8x16xi32>
    %cst_6 = arith.constant -1.000000e+06 : f32
    %13 = vector.broadcast %cst_6 : f32 to vector<8x16xf32>
    %14 = arith.select %12, %5, %13 : vector<8x16xi1>, vector<8x16xf32>
    %c0_7 = arith.constant 0 : index
    %c0_8 = arith.constant 0 : index
    %15 = vector.load %arg9[%c0_7, %c0_8] : memref<8x1xf32, #tpu.memory_space<vmem>>, vector<8x1xf32>
    %cst_9 = arith.constant dense<0xFF800000> : vector<8xf32>
    %16 = vector.multi_reduction <maximumf>, %14, %cst_9 [1] : vector<8x16xf32> to vector<8xf32>
    %17 = vector.shape_cast %16 : vector<8xf32> to vector<8x1xf32>
    %18 = arith.maximumf %15, %17 : vector<8x1xf32>
    %19 = arith.subf %15, %18 : vector<8x1xf32>
    %20 = math.exp %19 : vector<8x1xf32>
    %21 = vector.broadcast %18 : vector<8x1xf32> to vector<8x16xf32>
    %22 = arith.subf %14, %21 : vector<8x16xf32>
    %23 = math.exp %22 : vector<8x16xf32>
    %c0_10 = arith.constant 0 : index
    %c0_11 = arith.constant 0 : index
    %24 = vector.load %arg10[%c0_10, %c0_11] : memref<8x1xf32, #tpu.memory_space<vmem>>, vector<8x1xf32>
    %25 = arith.mulf %20, %24 : vector<8x1xf32>
    %cst_12 = arith.constant dense<0.000000e+00> : vector<8xf32>
    %26 = vector.multi_reduction <add>, %23, %cst_12 [1] : vector<8x16xf32> to vector<8xf32>
    %27 = vector.shape_cast %26 : vector<8xf32> to vector<8x1xf32>
    %28 = arith.addf %25, %27 : vector<8x1xf32>
    %c0_13 = arith.constant 0 : index
    %c0_14 = arith.constant 0 : index
    %29 = vector.load %arg10[%c0_13, %c0_14] : memref<8x1xf32, #tpu.memory_space<vmem>>, vector<8x1xf32>
    tpu.vector_store %arg10[%c0_13, %c0_14], %28 {strides = array<i32>} : memref<8x1xf32, #tpu.memory_space<vmem>>, vector<8x1xf32>,
    %c0_15 = arith.constant 0 : index
    %c0_16 = arith.constant 0 : index
    %30 = vector.load %arg11[%c0_15, %c0_16] : memref<8x32xf32, #tpu.memory_space<vmem>>, vector<8x32xf32>
    %31 = vector.broadcast %20 : vector<8x1xf32> to vector<8x32xf32>
    %32 = arith.mulf %31, %30 : vector<8x32xf32>
    %33 = arith.truncf %23 : vector<8x16xf32> to vector<8x16xbf16>
    %c0_17 = arith.constant 0 : index
    %c0_18 = arith.constant 0 : index
    %34 = vector.load %arg6[%c0_17, %c0_18] : memref<16x32xbf16, #tpu.memory_space<vmem>>, vector<16x32xbf16>
    %cst_19 = arith.constant dense<0.000000e+00> : vector<8x32xf32>
    %35 = tpu.matmul %33, %34, %cst_19 {dimension_numbers = #tpu.dot_dimension_numbers<[1], [0], [0], [1], [0, 0, 1, 1], [], []>} : vector<8x16xbf16>, vector<16x32xbf16>, vector<8x32xf32> -> vector<8x32xf32>
    %36 = arith.addf %32, %35 : vector<8x32xf32>
    %c0_20 = arith.constant 0 : index
    %c0_21 = arith.constant 0 : index
    %37 = vector.load %arg11[%c0_20, %c0_21] : memref<8x32xf32, #tpu.memory_space<vmem>>, vector<8x32xf32>
    tpu.vector_store %arg11[%c0_20, %c0_21], %36 {strides = array<i32>} : memref<8x32xf32, #tpu.memory_space<vmem>>, vector<8x32xf32>,
    %c0_22 = arith.constant 0 : index
    %c0_23 = arith.constant 0 : index
    %38 = vector.load %arg9[%c0_22, %c0_23] : memref<8x1xf32, #tpu.memory_space<vmem>>, vector<8x1xf32>
    tpu.vector_store %arg9[%c0_22, %c0_23], %18 {strides = array<i32>} : memref<8x1xf32, #tpu.memory_space<vmem>>, vector<8x1xf32>,
    %c0_i32_24 = arith.constant 0 : i32
    %39 = arith.cmpi eq, %arg1, %c0_i32_24 : i32
    %40 = arith.extui %39 : i1 to i32
    %c0_i32_25 = arith.constant 0 : i32
    %41 = arith.cmpi ne, %40, %c0_i32_25 : i32
    scf.if %41 {
      %c0_26 = arith.constant 0 : index
      %c0_27 = arith.constant 0 : index
      %42 = vector.load %arg10[%c0_26, %c0_27] : memref<8x1xf32, #tpu.memory_space<vmem>>, vector<8x1xf32>
      %43 = tpu.reciprocal %42 {approx = true} : vector<8x1xf32> -> vector<8x1xf32>
      %c0_28 = arith.constant 0 : index
      %c0_29 = arith.constant 0 : index
      %44 = vector.load %arg11[%c0_28, %c0_29] : memref<8x32xf32, #tpu.memory_space<vmem>>, vector<8x32xf32>
      %45 = vector.broadcast %43 : vector<8x1xf32> to vector<8x32xf32>
      %46 = arith.mulf %44, %45 : vector<8x32xf32>
      %c0_30 = arith.constant 0 : index
      %c0_31 = arith.constant 0 : index
      %47 = vector.load %arg7[%c0_30, %c0_31] : memref<8x32xf32, #tpu.memory_space<vmem>>, vector<8x32xf32>
      tpu.vector_store %arg7[%c0_30, %c0_31], %46 {strides = array<i32>} : memref<8x32xf32, #tpu.memory_space<vmem>>, vector<8x32xf32>,
    } else {
    }
    return
  }
  func.func @transform_0(%arg0: i32, %arg1: i32) -> (i32, i32) {
    %c0_i32 = arith.constant 0 : i32
    %c0_i32_0 = arith.constant 0 : i32
    return %arg0, %c0_i32 : i32, i32
  }
  func.func @transform_1(%arg0: i32, %arg1: i32) -> (i32, i32) {
    %c0_i32 = arith.constant 0 : i32
    %c0_i32_0 = arith.constant 0 : i32
    return %arg0, %c0_i32 : i32, i32
  }
  func.func @transform_2(%arg0: i32, %arg1: i32) -> (i32, i32) {
    %c0_i32 = arith.constant 0 : i32
    %c0_i32_0 = arith.constant 0 : i32
    return %arg0, %c0_i32 : i32, i32
  }
  func.func @transform_3(%arg0: i32, %arg1: i32) -> (i32, i32) {
    %c0_i32 = arith.constant 0 : i32
    %c0_i32_0 = arith.constant 0 : i32
    return %c0_i32, %arg1 : i32, i32
  }
  func.func @transform_4(%arg0: i32, %arg1: i32) -> (i32, i32) {
    %c0_i32 = arith.constant 0 : i32
    %c0_i32_0 = arith.constant 0 : i32
    return %arg1, %c0_i32 : i32, i32
  }
  func.func @transform_5(%arg0: i32, %arg1: i32) -> (i32, i32) {
    %c0_i32 = arith.constant 0 : i32
    %c0_i32_0 = arith.constant 0 : i32
    return %arg0, %c0_i32 : i32, i32
  }
}

</mosaic_0001>

<llo_original>
// kernel: tpu_custom_call.1
$region0: #{tpu_custom_call.1}
  #allocation0 [shape = 'u32[]', space=smem, size = 0x4, offset = 0x4, fixed_abs, tag = 'smem constant byte address 0x4 - core index']
  #allocation1 [shape = 'u32[144,128]{1,0:T(1,128)}', space=vmem, size = 0x12000, scoped, tag = 'internal scratch']
  #allocation2 [shape = 'bf16[8,32]{1,0:T(8,128)(2,1)}', space=vmem, size = 0x800, scoped, tag = 'scratch operand']
  #allocation3 [shape = 'f32[8,1]{1,0:T(8,128)}', space=vmem, size = 0x1000, scoped, tag = 'scratch operand']
  #allocation4 [shape = 'f32[8,1]{1,0:T(8,128)}', space=vmem, size = 0x1000, scoped, tag = 'scratch operand']
  #allocation5 [shape = 'f32[8,32]{1,0:T(8,128)}', space=vmem, size = 0x1000, scoped, tag = 'scratch operand']
  %s0 = inlined_call_operand.vmem [shape: f32[16,1], index: 0, kind: input, shape index: {}]
  %s1 = inlined_call_operand.vmem [shape: f32[16,32], index: 1, kind: input, shape index: {}]
  %s2 = inlined_call_operand.vmem [shape: s32[16,1], index: 2, kind: input, shape index: {}]
  %s3 = inlined_call_operand.vmem [shape: bf16[32,16], index: 3, kind: input, shape index: {}]
  %s4 = inlined_call_operand.vmem [shape: bf16[16,32], index: 4, kind: input, shape index: {}]
  %s5 = inlined_call_operand.hbm [shape: f32[16,32], index: 5, kind: output, shape index: {}]
  %s6 = sld [smem:[#allocation0]]
  $region61: #{tpu_custom_call.1} parent=0
    _
  %s8 = ssub.s32 1, %s6
  %s9 = scalar_select 0, %s8, %s6
  $region1: #{tpu_custom_call.1} parent=0
    #allocation6 [shape = 'u8[8192]{0}', space=vmem, size = 0x2000, scoped, tag = 'output window, operand 0']
    #allocation7 [shape = 's32[2]{0}', space=sflag, size = 0x8, scoped, tag = 'scoped memory for tpu_custom_call.1']
    %10 = vsyncpa [#allocation7], 0
    %s11 = scalar_lea.sflag [#allocation7], 1
    %12 = vsyncpa %s11, 0
    loop: start=0, step=1, limit=4
    $region2: #{tpu_custom_call.1} parent=1 // loop_pre_header
      _
    $region3: #{tpu_custom_call.1} parent=1 // loop_header
      %s14 = sphi 0, %s18
      %p15 = scmp.ge.s32.totalorder %s14, 4
      %s21 = sphi 0, %s33
      %s22 = sphi 0, %s29
      %s23 = sphi 0, %s21
      %s24 = sphi 0, %s22
      %s25 = sphi 0, %s23
      %s26 = sphi 0, %s24
      %s36 = sphi 0, %s38
      %s39 = sphi 0, %s36
      %s40 = sphi 0, %s39
      %s56 = sphi 0, %s40
      %s62 = sphi 0, %s64
      %s65 = sphi 0, %s62
      %s66 = sphi 0, %s65
      %s82 = sphi 0, %s66
      %s88 = sphi 0, %s90
      %s91 = sphi 0, %s88
      %s92 = sphi 0, %s91
      %s108 = sphi 0, %s92
      %s114 = sphi 0, %s116
      %s117 = sphi 0, %s114
      %s118 = sphi 0, %s117
      %s134 = sphi 0, %s118
      %s140 = sphi 0, %s142
      %s143 = sphi 0, %s140
      %s144 = sphi 0, %s143
      %s160 = sphi 0, %s144
      %s166 = sphi 0, %s168
      %s169 = sphi 0, %s166
      %s170 = sphi 0, %s169
      %s186 = sphi 0, %s170
    $region4: #{tpu_custom_call.1} parent=1 // loop_header_branch
      %17 = sbr.rel (%p15) target = $region8
    $region5: #{tpu_custom_call.1} parent=1 // loop_body
      %s19 = ssub.s32 %s14, 1
      %s20 = ssub.s32 %s14, 2
      %s27 = sadd.s32 1, %s22
      %p28 = scmp.ge.s32.totalorder %s27, 1
      %s29 = scalar_select %p28, 0, %s27
      %s30 = sadd.s32 1, %s21
      %s31 = scalar_select %p28, %s30, %s21
      %p32 = scmp.ge.s32.totalorder %s31, 2
      %s33 = scalar_select %p32, 0, %s31
      %s34 = ssub.s32 %s21, %s33
      %p35 = scmp.eq.s32.totalorder %s34, 0
      %s37 = sadd.s32 %s36, 1
      %s38 = scalar_select %p35, %s36, %s37
      %p41 = pneg %p35
      %p42 = scmp.eq.s32.totalorder %s14, 1
      %p43 = por %p41, %p42
      %p44 = scmp.ne.s32.totalorder %s36, %s39
      %p45 = scmp.eq.s32.totalorder %s14, 0
      %p46 = por %p44, %p45
      %p47 = scmp.ne.s32.totalorder %s36, %s39
      %p48 = scmp.eq.s32.totalorder %s19, 1
      %p49 = por %p47, %p48
      %p50 = scmp.ne.s32.totalorder %s39, %s40
      %p51 = scmp.eq.s32.totalorder %s19, 0
      %p52 = por %p50, %p51
      %p53 = scmp.ne.s32.totalorder %s39, %s40
      %p54 = scmp.eq.s32.totalorder %s20, 1
      %p55 = por %p53, %p54
      %p57 = scmp.ne.s32.totalorder %s40, %s56
      %p58 = scmp.eq.s32.totalorder %s20, 0
      %p59 = por %p57, %p58
      %s60 = ssub.s32 %s21, %s33
      %p61 = scmp.eq.s32.totalorder %s60, 0
      %s63 = sadd.s32 %s62, 1
      %s64 = scalar_select %p61, %s62, %s63
      %p67 = pneg %p61
      %p68 = scmp.eq.s32.totalorder %s14, 1
      %p69 = por %p67, %p68
      %p70 = scmp.ne.s32.totalorder %s62, %s65
      %p71 = scmp.eq.s32.totalorder %s14, 0
      %p72 = por %p70, %p71
      %p73 = scmp.ne.s32.totalorder %s62, %s65
      %p74 = scmp.eq.s32.totalorder %s19, 1
      %p75 = por %p73, %p74
      %p76 = scmp.ne.s32.totalorder %s65, %s66
      %p77 = scmp.eq.s32.totalorder %s19, 0
      %p78 = por %p76, %p77
      %p79 = scmp.ne.s32.totalorder %s65, %s66
      %p80 = scmp.eq.s32.totalorder %s20, 1
      %p81 = por %p79, %p80
      %p83 = scmp.ne.s32.totalorder %s66, %s82
      %p84 = scmp.eq.s32.totalorder %s20, 0
      %p85 = por %p83, %p84
      %s86 = ssub.s32 %s21, %s33
      %p87 = scmp.eq.s32.totalorder %s86, 0
      %s89 = sadd.s32 %s88, 1
      %s90 = scalar_select %p87, %s88, %s89
      %p93 = pneg %p87
      %p94 = scmp.eq.s32.totalorder %s14, 1
      %p95 = por %p93, %p94
      %p96 = scmp.ne.s32.totalorder %s88, %s91
      %p97 = scmp.eq.s32.totalorder %s14, 0
      %p98 = por %p96, %p97
      %p99 = scmp.ne.s32.totalorder %s88, %s91
      %p100 = scmp.eq.s32.totalorder %s19, 1
      %p101 = por %p99, %p100
      %p102 = scmp.ne.s32.totalorder %s91, %s92
      %p103 = scmp.eq.s32.totalorder %s19, 0
      %p104 = por %p102, %p103
      %p105 = scmp.ne.s32.totalorder %s91, %s92
      %p106 = scmp.eq.s32.totalorder %s20, 1
      %p107 = por %p105, %p106
      %p109 = scmp.ne.s32.totalorder %s92, %s108
      %p110 = scmp.eq.s32.totalorder %s20, 0
      %p111 = por %p109, %p110
      %s112 = ssub.s32 %s22, %s29
      %p113 = scmp.eq.s32.totalorder %s112, 0
      %s115 = sadd.s32 %s114, 1
      %s116 = scalar_select %p113, %s114, %s115
      %p119 = pneg %p113
      %p120 = scmp.eq.s32.totalorder %s14, 1
      %p121 = por %p119, %p120
      %p122 = scmp.ne.s32.totalorder %s114, %s117
      %p123 = scmp.eq.s32.totalorder %s14, 0
      %p124 = por %p122, %p123
      %p125 = scmp.ne.s32.totalorder %s114, %s117
      %p126 = scmp.eq.s32.totalorder %s19, 1
      %p127 = por %p125, %p126
      %p128 = scmp.ne.s32.totalorder %s117, %s118
      %p129 = scmp.eq.s32.totalorder %s19, 0
      %p130 = por %p128, %p129
      %p131 = scmp.ne.s32.totalorder %s117, %s118
      %p132 = scmp.eq.s32.totalorder %s20, 1
      %p133 = por %p131, %p132
      %p135 = scmp.ne.s32.totalorder %s118, %s134
      %p136 = scmp.eq.s32.totalorder %s20, 0
      %p137 = por %p135, %p136
      %s138 = ssub.s32 %s22, %s29
      %p139 = scmp.eq.s32.totalorder %s138, 0
      %s141 = sadd.s32 %s140, 1
      %s142 = scalar_select %p139, %s140, %s141
      %p145 = pneg %p139
      %p146 = scmp.eq.s32.totalorder %s14, 1
      %p147 = por %p145, %p146
      %p148 = scmp.ne.s32.totalorder %s140, %s143
      %p149 = scmp.eq.s32.totalorder %s14, 0
      %p150 = por %p148, %p149
      %p151 = scmp.ne.s32.totalorder %s140, %s143
      %p152 = scmp.eq.s32.totalorder %s19, 1
      %p153 = por %p151, %p152
      %p154 = scmp.ne.s32.totalorder %s143, %s144
      %p155 = scmp.eq.s32.totalorder %s19, 0
      %p156 = por %p154, %p155
      %p157 = scmp.ne.s32.totalorder %s143, %s144
      %p158 = scmp.eq.s32.totalorder %s20, 1
      %p159 = por %p157, %p158
      %p161 = scmp.ne.s32.totalorder %s144, %s160
      %p162 = scmp.eq.s32.totalorder %s20, 0
      %p163 = por %p161, %p162
      %s164 = ssub.s32 %s21, %s33
      %p165 = scmp.eq.s32.totalorder %s164, 0
      %s167 = sadd.s32 %s166, 1
      %s168 = scalar_select %p165, %s166, %s167
      %p171 = pneg %p165
      %p172 = scmp.eq.s32.totalorder %s14, 1
      %p173 = por %p171, %p172
      %p174 = scmp.ne.s32.totalorder %s166, %s169
      %p175 = scmp.eq.s32.totalorder %s14, 0
      %p176 = por %p174, %p175
      %p177 = scmp.ne.s32.totalorder %s166, %s169
      %p178 = scmp.eq.s32.totalorder %s19, 1
      %p179 = por %p177, %p178
      %p180 = scmp.ne.s32.totalorder %s169, %s170
      %p181 = scmp.eq.s32.totalorder %s19, 0
      %p182 = por %p180, %p181
      %p183 = scmp.ne.s32.totalorder %s169, %s170
      %p184 = scmp.eq.s32.totalorder %s20, 1
      %p185 = por %p183, %p184
      %p187 = scmp.ne.s32.totalorder %s170, %s186
      %p188 = scmp.eq.s32.totalorder %s20, 0
      %p189 = por %p187, %p188
      %p190 = scmp.le.s32.totalorder 1, %s14
      %p191 = scmp.lt.s32.totalorder %s14, 3
      %p192 = pnand %p190, %p191
      %p193 = pneg %p192
      // Predicated region
      $region9: #{tpu_custom_call.1} parent=5 // pred_check
        _
      $region10: #{tpu_custom_call.1} parent=5 // pred_check_branch
        %195 = sbr.rel (%p192) target = $region12
      $region11: #{tpu_custom_call.1} parent=5 // pred_region
        %s196 = ssub.s32 %s14, 1
        // Predicated region
        $region13: #{tpu_custom_call.1} parent=11 // pred_check
          %p197 = pneg %p130
        $region14: #{tpu_custom_call.1} parent=11 // pred_check_branch
          %199 = sbr.rel (%p197) target = $region16
        $region15: #{tpu_custom_call.1} parent=11 // pred_region
          %p200 = scmp.lt.s32.totalorder %s24, 0
          %s201 = scalar_select %p200, %s24, 0
          %s202 = smul.addr %s201, 4
          %s203 = scalar_lea.vmem %s3, %s202
        $region16: #{tpu_custom_call.1} parent=11 // pred_fallthru
          _
        // Predicated region
        $region17: #{tpu_custom_call.1} parent=11 // pred_check
          %p204 = pneg %p156
        $region18: #{tpu_custom_call.1} parent=11 // pred_check_branch
          %206 = sbr.rel (%p204) target = $region20
        $region19: #{tpu_custom_call.1} parent=11 // pred_region
          %s207 = smul.u32 2, %s24
          %p208 = scmp.lt.s32.totalorder %s207, 1
          %s209 = scalar_select %p208, %s207, 1
          %s210 = smul.addr %s209, 4
          %s211 = scalar_lea.vmem %s4, %s210
          %s212 = smul.u32 2, %s24
        $region20: #{tpu_custom_call.1} parent=11 // pred_fallthru
          _
      $region12: #{tpu_custom_call.1} parent=5 // pred_fallthru
        _
      %p213 = scmp.lt.s32.totalorder %s14, 2
      // Predicated region
      $region21: #{tpu_custom_call.1} parent=5 // pred_check
        %p214 = pneg %p213
      $region22: #{tpu_custom_call.1} parent=5 // pred_check_branch
        %216 = sbr.rel (%p214) target = $region24
      $region23: #{tpu_custom_call.1} parent=5 // pred_region
        // Predicated region
        $region25: #{tpu_custom_call.1} parent=23 // pred_check
          %p217 = pneg %p46
        $region26: #{tpu_custom_call.1} parent=23 // pred_check_branch
          %219 = sbr.rel (%p217) target = $region28
        $region27: #{tpu_custom_call.1} parent=23 // pred_region
          %p220 = scmp.lt.s32.totalorder %s21, 1
          %s221 = scalar_select %p220, %s21, 1
          %s222 = smul.addr %s221, 8
          %s223 = scalar_lea.vmem %s0, %s222
        $region28: #{tpu_custom_call.1} parent=23 // pred_fallthru
          _
        // Predicated region
        $region29: #{tpu_custom_call.1} parent=23 // pred_check
          %p224 = pneg %p72
        $region30: #{tpu_custom_call.1} parent=23 // pred_check_branch
          %226 = sbr.rel (%p224) target = $region32
        $region31: #{tpu_custom_call.1} parent=23 // pred_region
          %p227 = scmp.lt.s32.totalorder %s21, 1
          %s228 = scalar_select %p227, %s21, 1
          %s229 = smul.addr %s228, 8
          %s230 = scalar_lea.vmem %s1, %s229
        $region32: #{tpu_custom_call.1} parent=23 // pred_fallthru
          _
        // Predicated region
        $region33: #{tpu_custom_call.1} parent=23 // pred_check
          %p231 = pneg %p98
        $region34: #{tpu_custom_call.1} parent=23 // pred_check_branch
          %233 = sbr.rel (%p231) target = $region36
        $region35: #{tpu_custom_call.1} parent=23 // pred_region
          %p234 = scmp.lt.s32.totalorder %s21, 1
          %s235 = scalar_select %p234, %s21, 1
          %s236 = smul.addr %s235, 8
          %s237 = scalar_lea.vmem %s2, %s236
        $region36: #{tpu_custom_call.1} parent=23 // pred_fallthru
          _
      $region24: #{tpu_custom_call.1} parent=5 // pred_fallthru
        _
      %p238 = scmp.le.s32.totalorder 1, %s14
      %p239 = scmp.lt.s32.totalorder %s14, 3
      %p240 = pnand %p238, %p239
      %p241 = pneg %p240
      // Predicated region
      $region37: #{tpu_custom_call.1} parent=5 // pred_check
        _
      $region38: #{tpu_custom_call.1} parent=5 // pred_check_branch
        %243 = sbr.rel (%p240) target = $region40
      $region39: #{tpu_custom_call.1} parent=5 // pred_region
        %s244 = ssub.s32 %s14, 1
        %p245 = scmp.lt.s32.totalorder %s23, 1
        %s246 = scalar_select %p245, %s23, 1
        %s247 = smul.addr %s246, 8
        %s248 = scalar_lea.vmem %s0, %s247
        %p249 = pneg %p52
        %p250 = pneg %p49
        %p251 = scmp.lt.s32.totalorder %s23, 1
        %s252 = scalar_select %p251, %s23, 1
        %s253 = smul.addr %s252, 8
        %s254 = scalar_lea.vmem %s1, %s253
        %p255 = pneg %p78
        %p256 = pneg %p75
        %p257 = scmp.lt.s32.totalorder %s23, 1
        %s258 = scalar_select %p257, %s23, 1
        %s259 = smul.addr %s258, 8
        %s260 = scalar_lea.vmem %s2, %s259
        %p261 = pneg %p104
        %p262 = pneg %p101
        %p263 = scmp.lt.s32.totalorder %s24, 0
        %s264 = scalar_select %p263, %s24, 0
        %s265 = smul.addr %s264, 4
        %s266 = scalar_lea.vmem %s3, %s265
        %p267 = pneg %p130
        %p268 = pneg %p127
        %s269 = smul.u32 2, %s24
        %p270 = scmp.lt.s32.totalorder %s269, 1
        %s271 = scalar_select %p270, %s269, 1
        %s272 = smul.addr %s271, 4
        %s273 = scalar_lea.vmem %s4, %s272
        %p274 = pneg %p156
        %p275 = pneg %p153
        %p276 = pneg %p182
        %p277 = pneg %p179
        %s278 = sand.u32 %s169, 1
        %s279 = scalar_lea.sflag [#allocation7], %s278
        %s280 = sand.u32 %s169, 1
        %s281 = smul.addr %s280, 8
        %s282 = scalar_lea.vmem [#allocation6], %s281
        %p283 = scmp.lt.s32.totalorder %s23, 1
        %s284 = scalar_select %p283, %s23, 1
        %s285 = smul.addr %s284, 8
        %s286 = scalar_lea.vmem %s0, %s285
        %p287 = scmp.lt.s32.totalorder %s23, 1
        %s288 = scalar_select %p287, %s23, 1
        %s289 = smul.addr %s288, 8
        %s290 = scalar_lea.vmem %s1, %s289
        %p291 = scmp.lt.s32.totalorder %s23, 1
        %s292 = scalar_select %p291, %s23, 1
        %s293 = smul.addr %s292, 8
        %s294 = scalar_lea.vmem %s2, %s293
        %p295 = scmp.lt.s32.totalorder %s24, 0
        %s296 = scalar_select %p295, %s24, 0
        %s297 = smul.addr %s296, 4
        %s298 = scalar_lea.vmem %s3, %s297
        %s299 = smul.u32 2, %s24
        %p300 = scmp.lt.s32.totalorder %s299, 1
        %s301 = scalar_select %p300, %s299, 1
        %s302 = smul.addr %s301, 4
        %s303 = scalar_lea.vmem %s4, %s302
        %s304 = smul.u32 2, %s24
        %p306 = scmp.eq.s32.totalorder %s24, 0
        // Predicated region
        $region41: #{tpu_custom_call.1} parent=39 // pred_check
          %p307 = pneg %p306
        $region42: #{tpu_custom_call.1} parent=39 // pred_check_branch
          %309 = sbr.rel (%p307) target = $region44
        $region43: #{tpu_custom_call.1} parent=39 // pred_region
          %v310 = vld [vmem:[%s286] sm:$0xff]
          %v311 = vld [vmem:[%s290] sm:$0xff]
          %313 = vset.pattern.permute.xlu0 0
          %314 = vperm.xlu0 %313, %v310
          %v315 = vpop.permute.xlu0 %314
          %v317 = vmul.f32 %v315, %v311
          %v318 = vmul.f32 %v317, 0.17677669
          %v319 = vpack.c.bf16 %v318, %v318
          %vm320 = vcmask 257024
          %321 = vst.msk [vmem:[#allocation2] sm:$0xf] %vm320, %v319
          %vm322 = vcmask 7168
          %323 = vst.msk [vmem:[#allocation3] sm:$0xff] %vm322, -inf
          %324 = vst.msk [vmem:[#allocation4] sm:$0xff] %vm322, 0.0
          %vm325 = vcmask 261120
          %326 = vst.msk [vmem:[#allocation5] sm:$0xff] %vm325, 0.0
        $region44: #{tpu_custom_call.1} parent=39 // pred_fallthru
          _
        %v327 = vld [vmem:[#allocation2] sm:$0xf]
        %v328 = vld [vmem:[%s298] sm:$0xf]
        %v329 = vld [vmem:[%s298 + $0x4] sm:$0xf]
        %v330 = vld [vmem:[%s298 + $0x8] sm:$0xf]
        %v331 = vld [vmem:[%s298 + $0xc] sm:$0xf]
        %v336 = vunpack.c.l.b16 %v328
        %v337 = vunpack.c.l.b16 %v329
        %v338 = vunpack.c.l.b16 %v330
        %v339 = vunpack.c.l.b16 %v331
        %v340 = vpack.c.b16 %v337, %v336
        %v341 = vpack.c.b16 %v339, %v338
        %vm344 = vcmask 261120
        %v346 = vsel %vm344, %v327, 0
        %348 = vmatprep.subr.bf16.mxu0 0
        %349 = vmatpush1.bf16.msra.mxu0 %v340
        %350 = vmatprep.subr.bf16.mxu0 0
        %351 = vmatpush1.bf16.msra.mxu0 %v341
        %352 = vmatprep.subr.bf16.mxu0 0
        %353 = vmatpush1.bf16.msra.mxu0 0
        %354 = vmatprep.subr.bf16.mxu0 0
        %355 = vmatpush1.bf16.msra.mxu0 0
        %356 = vmatprep.subr.bf16.mxu0 0
        %357 = vmatpush1.bf16.msra.mxu0 0
        %358 = vmatprep.subr.bf16.mxu0 0
        %359 = vmatpush1.bf16.msra.mxu0 0
        %360 = vmatprep.subr.bf16.mxu0 0
        %361 = vmatpush1.bf16.msra.mxu0 0
        %362 = vmatprep.subr.bf16.mxu0 0
        %363 = vmatpush1.bf16.msra.mxu0 0
        %364 = vmatprep.subr.bf16.mxu0 0
        %365 = vmatpush1.bf16.msra.mxu0 0
        %366 = vmatprep.subr.bf16.mxu0 0
        %367 = vmatpush1.bf16.msra.mxu0 0
        %368 = vmatprep.subr.bf16.mxu0 0
        %369 = vmatpush1.bf16.msra.mxu0 0
        %370 = vmatprep.subr.bf16.mxu0 0
        %371 = vmatpush1.bf16.msra.mxu0 0
        %372 = vmatprep.subr.bf16.mxu0 0
        %373 = vmatpush1.bf16.msra.mxu0 0
        %374 = vmatprep.subr.bf16.mxu0 0
        %375 = vmatpush1.bf16.msra.mxu0 0
        %376 = vmatprep.subr.bf16.mxu0 0
        %377 = vmatpush1.bf16.msra.mxu0 0
        %378 = vmatprep.subr.bf16.mxu0 0
        %379 = vmatpush1.bf16.msra.mxu0 0
        %380 = vmatprep.mubr.bf16.mxu0 0
        %381 = vmatmul.mubr.bf16.gmra.mrb[0].mxu0 %v346
        %v382 = vpop.f32.mrb[0].mxu0
        %v383 = vadd.f32 0.0, %v382
        %v384 = vpop.f32.mrb[0].mxu0
        %v385 = vpop.f32.mrb[0].mxu0
        %v386 = vpop.f32.mrb[0].mxu0
        %387 = vdwg.mxu0
        %s388 = smul.u32 %s24, 16
        %v389 = vlaneseq
        %v390 = vand.u32 %v389, 127
        %v391 = vstv %s388
        %v392 = vadd.s32 %v391, %v390
        %v393 = vld [vmem:[%s294] sm:$0xff]
        %394 = vset.pattern.permute.xlu0 0
        %395 = vperm.xlu0 %394, %v393
        %v396 = vpop.permute.xlu0 %395
        %vm397 = vcmp.lt.s32.totalorder %v392, %v396
        %v398 = vsel %vm397, %v383, -1000000.0
        %v399 = vld [vmem:[#allocation3] sm:$0xff]
        %vm400 = vcmask 130048
        %v401 = vsel %vm400, %v398, -inf
        %402 = vmax.xlane.f32.xlu0 %v401
        %v403 = vpop.xlane.xlu0 %402
        %v404 = vmax.f32 %v399, %v403
        %v405 = vsub.f32 %v399, %v404
        %v406 = vmul.f32 %v405, 1.442695
        %v407 = vpow.pop %v406
        %409 = vset.pattern.permute.xlu0 0
        %410 = vperm.xlu0 %409, %v404
        %v411 = vpop.permute.xlu0 %410
        %v413 = vsub.f32 %v398, %v411
        %v414 = vmul.f32 %v413, 1.442695
        %v415 = vpow.pop %v414
        %v416 = vld [vmem:[#allocation4] sm:$0xff]
        %v417 = vmul.f32 %v407, %v416
        %v418 = vsel %vm400, %v415, 0.0
        %419 = vadd.xlane.f32.xlu0 %v418
        %v420 = vpop.xlane.xlu0 %419
        %v421 = vadd.f32 %v417, %v420
        %vm422 = vcmask 7168
        %423 = vst.msk [vmem:[#allocation4] sm:$0xff] %vm422, %v421
        %v424 = vld [vmem:[#allocation5] sm:$0xff]
        %426 = vset.pattern.permute.xlu0 0
        %427 = vperm.xlu0 %426, %v407
        %v428 = vpop.permute.xlu0 %427
        %v430 = vmul.f32 %v428, %v424
        %v431 = vpack.c.bf16 %v415, %v415
        %v432 = vld [vmem:[%s303] sm:$0xf]
        %v433 = vld [vmem:[%s303 + $0x4] sm:$0xf]
        %v436 = vunpack.c.l.b16 %v432
        %v437 = vunpack.c.l.b16 %v433
        %v438 = vpack.c.b16 %v437, %v436
        %v441 = vsel %vm400, %v431, 0
        %443 = vmatprep.subr.bf16.mxu0 0
        %444 = vmatpush1.bf16.msra.mxu0 %v438
        %445 = vmatprep.subr.bf16.mxu0 0
        %446 = vmatpush1.bf16.msra.mxu0 0
        %447 = vmatprep.subr.bf16.mxu0 0
        %448 = vmatpush1.bf16.msra.mxu0 0
        %449 = vmatprep.subr.bf16.mxu0 0
        %450 = vmatpush1.bf16.msra.mxu0 0
        %451 = vmatprep.subr.bf16.mxu0 0
        %452 = vmatpush1.bf16.msra.mxu0 0
        %453 = vmatprep.subr.bf16.mxu0 0
        %454 = vmatpush1.bf16.msra.mxu0 0
        %455 = vmatprep.subr.bf16.mxu0 0
        %456 = vmatpush1.bf16.msra.mxu0 0
        %457 = vmatprep.subr.bf16.mxu0 0
        %458 = vmatpush1.bf16.msra.mxu0 0
        %459 = vmatprep.subr.bf16.mxu0 0
        %460 = vmatpush1.bf16.msra.mxu0 0
        %461 = vmatprep.subr.bf16.mxu0 0
        %462 = vmatpush1.bf16.msra.mxu0 0
        %463 = vmatprep.subr.bf16.mxu0 0
        %464 = vmatpush1.bf16.msra.mxu0 0
        %465 = vmatprep.subr.bf16.mxu0 0
        %466 = vmatpush1.bf16.msra.mxu0 0
        %467 = vmatprep.subr.bf16.mxu0 0
        %468 = vmatpush1.bf16.msra.mxu0 0
        %469 = vmatprep.subr.bf16.mxu0 0
        %470 = vmatpush1.bf16.msra.mxu0 0
        %471 = vmatprep.subr.bf16.mxu0 0
        %472 = vmatpush1.bf16.msra.mxu0 0
        %473 = vmatprep.subr.bf16.mxu0 0
        %474 = vmatpush1.bf16.msra.mxu0 0
        %475 = vmatprep.mubr.bf16.mxu0 0
        %476 = vmatmul.mubr.bf16.gmra.mrb[0].mxu0 %v441
        %v477 = vpop.f32.mrb[0].mxu0
        %v478 = vadd.f32 0.0, %v477
        %v479 = vpop.f32.mrb[0].mxu0
        %v480 = vpop.f32.mrb[0].mxu0
        %v481 = vpop.f32.mrb[0].mxu0
        %482 = vdwg.mxu0
        %v483 = vadd.f32 %v430, %v478
        %484 = vst.msk [vmem:[#allocation5] sm:$0xff] %vm344, %v483
        %485 = vst.msk [vmem:[#allocation3] sm:$0xff] %vm422, %v404
        // Predicated region
        $region45: #{tpu_custom_call.1} parent=39 // pred_check
          %p486 = pneg %p306
        $region46: #{tpu_custom_call.1} parent=39 // pred_check_branch
          %488 = sbr.rel (%p486) target = $region48
        $region47: #{tpu_custom_call.1} parent=39 // pred_region
          %v489 = vld [vmem:[#allocation4] sm:$0xff]
          %v490 = vrcp.pop %v489
          %v491 = vld [vmem:[#allocation5] sm:$0xff]
          %493 = vset.pattern.permute.xlu0 0
          %494 = vperm.xlu0 %493, %v490
          %v495 = vpop.permute.xlu0 %494
          %v497 = vmul.f32 %v491, %v495
          %498 = vst.msk [vmem:[%s282] sm:$0xff] %vm344, %v497
        $region48: #{tpu_custom_call.1} parent=39 // pred_fallthru
          _
        %s499 = sand.u32 %s169, 1
        %s500 = scalar_lea.sflag [#allocation7], %s499
        %s501 = sand.u32 %s169, 1
        %s502 = smul.addr %s501, 8
        %s503 = scalar_lea.vmem [#allocation6], %s502
        // Predicated region
        $region49: #{tpu_custom_call.1} parent=39 // pred_check
          %p504 = pneg %p179
        $region50: #{tpu_custom_call.1} parent=39 // pred_check_branch
          %506 = sbr.rel (%p504) target = $region52
        $region51: #{tpu_custom_call.1} parent=39 // pred_region
          %s508 = ssub.s32 128, 128
          %509 = vsyncadd %s500, %s508
          %s510 = smul.addr %s23, 128
          %s511 = scalar_lea.hbm %s5, %s510
          %s513 = sshll.u32 %s503, 4
          %s514 = int_to_ptr.vmem [resolvable:$true] %s513
          %516 = dma.vmem_to_hbm [thread:$0]  %s514, 128, %s511, %s500
        $region52: #{tpu_custom_call.1} parent=39 // pred_fallthru
          _
      $region40: #{tpu_custom_call.1} parent=5 // pred_fallthru
        _
      %p517 = scmp.le.s32.totalorder 2, %s14
      // Predicated region
      $region53: #{tpu_custom_call.1} parent=5 // pred_check
        %p518 = pneg %p517
      $region54: #{tpu_custom_call.1} parent=5 // pred_check_branch
        %520 = sbr.rel (%p518) target = $region56
      $region55: #{tpu_custom_call.1} parent=5 // pred_region
        %s521 = ssub.s32 %s14, 2
        // Predicated region
        $region57: #{tpu_custom_call.1} parent=55 // pred_check
          %p522 = pneg %p185
        $region58: #{tpu_custom_call.1} parent=55 // pred_check_branch
          %524 = sbr.rel (%p522) target = $region60
        $region59: #{tpu_custom_call.1} parent=55 // pred_region
          %s525 = sand.u32 %s170, 1
          %s526 = scalar_lea.sflag [#allocation7], %s525
          %s527 = sand.u32 %s170, 1
          %s528 = smul.addr %s527, 8
          %s529 = scalar_lea.vmem [#allocation6], %s528
          %530 = dma.done %s526, 128
        $region60: #{tpu_custom_call.1} parent=55 // pred_fallthru
          _
      $region56: #{tpu_custom_call.1} parent=5 // pred_fallthru
        _
    $region6: #{tpu_custom_call.1} parent=1 // loop_footer
      %s18 = sadd.s32 1, %s14
    $region7: #{tpu_custom_call.1} parent=1 // loop_footer_branch
      %13 = sbr.rel target = $region3
    $region8: #{tpu_custom_call.1} parent=1 // loop_exit
      _
    %531 = vsyncpa [#allocation7], 1
    %s532 = scalar_lea.sflag [#allocation7], 1
    %533 = vsyncpa %s532, 1

</llo_original>
